<compile_context>
chip_gen: v5e
topology: v5e:2x2
jax: 0.10.0
libtpu: 0.0.40
codegen_flags: <defaults>
</compile_context>

<pallas_src>
import functools

import jax
import jax.numpy as jnp
from jax.experimental import pallas as pl
from jax.experimental.pallas import tpu as pltpu


def _round_up(x, m):
    return ((x + m - 1) // m) * m


def _pick_block_n(d_out_pad, cap=2048):
    """Largest multiple-of-128 N tile <= cap that (preferably) divides d_out_pad."""
    if d_out_pad <= cap:
        return d_out_pad
    q = d_out_pad // 128
    for f in range(cap // 128, 0, -1):
        if q % f == 0:
            return f * 128
    return cap


def _generator_kernel(x_ref, w1_ref, b1_ref, w2_ref, b2_ref, out_ref, h_ref):
    """Fused per-tile body.

    Grid = (M tiles, N tiles), N innermost ("arbitrary").
      j == 0 : h = ReLU(x @ W1 + b1)   -> cached in VMEM scratch (bf16)
      all j  : out[:, nj] = tanh(h @ W2[:, nj] + b2[nj])
    """
    @pl.when(pl.program_id(1) == 0)
    def _():
        h = jnp.dot(x_ref[...], w1_ref[...], preferred_element_type=jnp.float32)
        h_ref[...] = jnp.maximum(h + b1_ref[...], 0.0).astype(h_ref.dtype)

    o = jnp.dot(h_ref[...], w2_ref[...], preferred_element_type=jnp.float32)
    z = o + b2_ref[...]
    if out_ref.dtype != jnp.float32:
        # bf16 tanh input: half the EUP / vreg / store width (native on
        # v6e/v7x; still correct on v5e, Mosaic upconverts internally).
        z = z.astype(out_ref.dtype)
    out_ref[...] = jnp.tanh(z).astype(out_ref.dtype)


def generator_forward(text, noise, params, img_size, *,
                      block_m=None, block_n=None, out_dtype=jnp.bfloat16):
    """text: (B, text_dim) f32, noise: (B, noise_dim) f32 ->
    (B, 3, img_size, img_size) in `out_dtype` (default bf16)."""
    w1, b1, w2, b2 = params
    B = text.shape[0]
    d_in, hidden = w1.shape
    d_out = 3 * img_size * img_size
    cdt = w1.dtype
    assert text.shape[1] + noise.shape[1] == d_in
    assert w2.shape[0] == hidden and w2.shape[1] >= d_out

    # Lane-dense output: pad W2 / b2 columns to a multiple of 128 (zero weights
    # -> padded outputs are tanh(0)=0 and sliced off once below).
    if w2.shape[1] % 128 != 0:
        pad = _round_up(w2.shape[1], 128) - w2.shape[1]
        w2 = jnp.pad(w2, ((0, 0), (0, pad)))
        b2 = jnp.pad(b2, ((0, 0), (0, pad)))
    d_out_pad = w2.shape[1]

    # Single concat + bf16 cast in the wrapper (tiny) so the kernel runs one
    # lane-dense K=d_in matmul instead of two under-filled ones.
    x = jnp.concatenate([text, noise], axis=1).astype(cdt)

    # ---- block selection -------------------------------------------------
    if block_m is None:
        if B >= 128:
            # >= 2 parallel M blocks so both v7x TensorCores are busy.
            block_m = min(512, _round_up(-(-B // 2), 8))
        else:
            block_m = _round_up(B, 8)
    if block_n is None:
        block_n = _pick_block_n(d_out_pad)
    block_m = min(block_m, _round_up(B, 8))
    block_n = min(block_n, d_out_pad)
    assert block_m % 8 == 0 and block_n % 128 == 0

    grid = (pl.cdiv(B, block_m), pl.cdiv(d_out_pad, block_n))

    # ---- VMEM budget (double-buffered blocks + scratch) -------------------
    cbytes = jnp.dtype(cdt).itemsize
    obytes = jnp.dtype(out_dtype).itemsize
    vmem_bytes = (2 * block_m * d_in * cbytes          # x
                  + 2 * d_in * hidden * cbytes         # W1
                  + 2 * hidden * 4                     # b1 (f32)
                  + 2 * hidden * block_n * cbytes      # W2 tile
                  + 2 * block_n * 4                    # b2 tile (f32)
                  + 2 * block_m * block_n * obytes     # out tile
                  + block_m * hidden * cbytes)         # h scratch
    vmem_limit = min(64 * 1024 * 1024,
                     max(32 * 1024 * 1024, int(vmem_bytes * 1.5) + (1 << 20)))

    cost = pl.CostEstimate(
        flops=2 * B * (d_in * hidden + hidden * d_out_pad),
        transcendentals=B * d_out_pad,
        bytes_accessed=(B * d_in * cbytes
                        + (d_in * hidden + hidden * d_out_pad) * cbytes
                        + (hidden + d_out_pad) * 4
                        + B * d_out_pad * obytes),
    )

    flat = pl.pallas_call(
        _generator_kernel,
        out_shape=jax.ShapeDtypeStruct((B, d_out_pad), out_dtype),
        grid=grid,
        in_specs=[
            pl.BlockSpec((block_m, d_in), lambda i, j: (i, 0)),    # x
            pl.BlockSpec((d_in, hidden), lambda i, j: (0, 0)),     # W1
            pl.BlockSpec((1, hidden), lambda i, j: (0, 0)),        # b1
            pl.BlockSpec((hidden, block_n), lambda i, j: (0, j)),  # W2
            pl.BlockSpec((1, block_n), lambda i, j: (0, j)),       # b2
        ],
        out_specs=pl.BlockSpec((block_m, block_n), lambda i, j: (i, j)),
        scratch_shapes=[pltpu.VMEM((block_m, hidden), cdt)],       # cached h
        compiler_params=pltpu.CompilerParams(
            dimension_semantics=("parallel", "arbitrary"),
            vmem_limit_bytes=vmem_limit),
        cost_estimate=cost,
    )(x, w1, b1, w2, b2)

    if d_out_pad != d_out:
        flat = flat[:, :d_out]   # only when 3*S*S is not 128-aligned
    # Row-major reshape -> NCHW, identical to torch .view(B, 3, S, S).
    return flat.reshape(B, 3, img_size, img_size)


def generator_reference(text, noise, params, img_size, out_dtype=jnp.bfloat16):
    """Pure-JAX reference using the exact same mixed-precision recipe."""
    w1, b1, w2, b2 = params
    cdt = w1.dtype
    x = jnp.concatenate([text, noise], axis=1).astype(cdt)
    h = jnp.dot(x, w1, preferred_element_type=jnp.float32)
    h = jnp.maximum(h + b1, 0.0).astype(cdt)
    o = jnp.dot(h, w2, preferred_element_type=jnp.float32)
    z = o + b2
    if out_dtype != jnp.float32:
        z = z.astype(out_dtype)
    img = jnp.tanh(z).astype(out_dtype)
    d_out = 3 * img_size * img_size
    return img[:, :d_out].reshape(text.shape[0], 3, img_size, img_size)


def init_params(key, text_dim, noise_dim, img_size, hidden=256,
                weight_dtype=jnp.bfloat16):
    """nn.Linear-style init (U[-1/sqrt(fan_in), +...]) in f32; weights cast to
    bf16 for the MXU; W2/b2 columns zero-padded to a multiple of 128."""
    d_in = text_dim + noise_dim
    d_out = 3 * img_size * img_size
    d_out_pad = _round_up(d_out, 128)
    k1, k2, k3, k4 = jax.random.split(key, 4)
    lim1 = float(d_in) ** -0.5
    lim2 = float(hidden) ** -0.5
    w1 = jax.random.uniform(k1, (d_in, hidden), jnp.float32, -lim1, lim1)
    b1 = jax.random.uniform(k2, (1, hidden), jnp.float32, -lim1, lim1)
    w2 = jax.random.uniform(k3, (hidden, d_out), jnp.float32, -lim2, lim2)
    b2 = jax.random.uniform(k4, (1, d_out), jnp.float32, -lim2, lim2)
    if d_out_pad != d_out:
        w2 = jnp.pad(w2, ((0, 0), (0, d_out_pad - d_out)))
        b2 = jnp.pad(b2, ((0, 0), (0, d_out_pad - d_out)))
    return (w1.astype(weight_dtype), b1, w2.astype(weight_dtype), b2)


if __name__ == "__main__":
    # Small shapes consistent with the module's forward (scaled-down dims):
    #   text_dim=96, noise_dim=32 (d_in=128), hidden=256, img_size=16, batch=64.
    batch, text_dim, noise_dim, img_size = 64, 96, 32, 16

    key = jax.random.PRNGKey(0)
    k_text, k_noise, k_params = jax.random.split(key, 3)
    text = jax.random.normal(k_text, (batch, text_dim), jnp.float32)
    noise = jax.random.normal(k_noise, (batch, noise_dim), jnp.float32)
    params = init_params(k_params, text_dim, noise_dim, img_size)

    fwd = jax.jit(functools.partial(generator_forward, img_size=img_size))
    img = jax.block_until_ready(fwd(text, noise, params))
    assert img.shape == (batch, 3, img_size, img_size)
    assert img.dtype == jnp.bfloat16

    ref = generator_reference(text, noise, params, img_size)
    err = float(jnp.max(jnp.abs(img.astype(jnp.float32) - ref.astype(jnp.float32))))
    assert err < 2e-2, err

    # Second check: exercise the tiled (M, N) grid with a ragged batch
    # (B % block_m != 0, no pad/slice round trip) and multiple d_out tiles.
    batch2 = 200
    k_t2, k_n2 = jax.random.split(jax.random.PRNGKey(1))
    text2 = jax.random.normal(k_t2, (batch2, text_dim), jnp.float32)
    noise2 = jax.random.normal(k_n2, (batch2, noise_dim), jnp.float32)
    img2 = jax.block_until_ready(
        generator_forward(text2, noise2, params, img_size,
                          block_m=64, block_n=256))
    ref2 = generator_reference(text2, noise2, params, img_size)
    err2 = float(jnp.max(jnp.abs(img2.astype(jnp.float32) - ref2.astype(jnp.float32))))
    assert err2 < 2e-2, err2

    print("KERNEL_OK")
</pallas_src>

<mosaic_0001>
module attributes {stable_mosaic.version = 11 : i64} {
  func.func @_generator_kernel(%arg0: i32, %arg1: i32, %arg2: memref<64x128xbf16, #tpu.memory_space<vmem>>, %arg3: memref<128x256xbf16, #tpu.memory_space<vmem>>, %arg4: memref<1x256xf32, #tpu.memory_space<vmem>>, %arg5: memref<256x768xbf16, #tpu.memory_space<vmem>>, %arg6: memref<1x768xf32, #tpu.memory_space<vmem>>, %arg7: memref<64x768xbf16, #tpu.memory_space<vmem>>, %arg8: memref<64x256xbf16, #tpu.memory_space<vmem>>) attributes {dimension_semantics = [#tpu.dimension_semantics<parallel>, #tpu.dimension_semantics<arbitrary>], iteration_bounds = array<i64: 1, 1>, scalar_prefetch = 0 : i64, scratch_operands = 1 : i64, tpu.core_type = #tpu.core_type<tc>, window_params = [{transform_indices = @transform_0, window_bounds = array<i64: 64, 128>}, {pipeline_mode = #tpu.pipeline_mode<synchronous>, transform_indices = @transform_1, window_bounds = array<i64: 128, 256>}, {pipeline_mode = #tpu.pipeline_mode<synchronous>, transform_indices = @transform_2, window_bounds = array<i64: 1, 256>}, {transform_indices = @transform_3, window_bounds = array<i64: 256, 768>}, {transform_indices = @transform_4, window_bounds = array<i64: 1, 768>}, {transform_indices = @transform_5, window_bounds = array<i64: 64, 768>}]} {
    %c0_i32 = arith.constant 0 : i32
    %0 = arith.cmpi eq, %arg1, %c0_i32 : i32
    %1 = arith.extui %0 : i1 to i32
    %c0_i32_0 = arith.constant 0 : i32
    %2 = arith.cmpi ne, %1, %c0_i32_0 : i32
    scf.if %2 {
      %c0_8 = arith.constant 0 : index
      %c0_9 = arith.constant 0 : index
      %12 = vector.load %arg2[%c0_8, %c0_9] : memref<64x128xbf16, #tpu.memory_space<vmem>>, vector<64x128xbf16>
      %c0_10 = arith.constant 0 : index
      %c0_11 = arith.constant 0 : index
      %13 = vector.load %arg3[%c0_10, %c0_11] : memref<128x256xbf16, #tpu.memory_space<vmem>>, vector<128x256xbf16>
      %cst_12 = arith.constant dense<0.000000e+00> : vector<64x256xf32>
      %14 = tpu.matmul %12, %13, %cst_12 {dimension_numbers = #tpu.dot_dimension_numbers<[1], [0], [0], [1], [0, 0, 1, 1], [], []>} : vector<64x128xbf16>, vector<128x256xbf16>, vector<64x256xf32> -> vector<64x256xf32>
      %c0_13 = arith.constant 0 : index
      %c0_14 = arith.constant 0 : index
      %15 = vector.load %arg4[%c0_13, %c0_14] : memref<1x256xf32, #tpu.memory_space<vmem>>, vector<1x256xf32>
      %16 = vector.broadcast %15 : vector<1x256xf32> to vector<64x256xf32>
      %17 = arith.addf %14, %16 : vector<64x256xf32>
      %cst_15 = arith.constant 0.000000e+00 : f32
      %18 = vector.broadcast %cst_15 : f32 to vector<64x256xf32>
      %19 = arith.maximumf %17, %18 : vector<64x256xf32>
      %20 = arith.truncf %19 : vector<64x256xf32> to vector<64x256xbf16>
      %c0_16 = arith.constant 0 : index
      %c0_17 = arith.constant 0 : index
      %21 = vector.load %arg8[%c0_16, %c0_17] : memref<64x256xbf16, #tpu.memory_space<vmem>>, vector<64x256xbf16>
      tpu.vector_store %arg8[%c0_16, %c0_17], %20 {strides = array<i32>} : memref<64x256xbf16, #tpu.memory_space<vmem>>, vector<64x256xbf16>,
    } else {
    }
    %c0 = arith.constant 0 : index
    %c0_1 = arith.constant 0 : index
    %3 = vector.load %arg8[%c0, %c0_1] : memref<64x256xbf16, #tpu.memory_space<vmem>>, vector<64x256xbf16>
    %c0_2 = arith.constant 0 : index
    %c0_3 = arith.constant 0 : index
    %4 = vector.load %arg5[%c0_2, %c0_3] : memref<256x768xbf16, #tpu.memory_space<vmem>>, vector<256x768xbf16>
    %cst = arith.constant dense<0.000000e+00> : vector<64x768xf32>
    %5 = tpu.matmul %3, %4, %cst {dimension_numbers = #tpu.dot_dimension_numbers<[1], [0], [0], [1], [0, 0, 1, 1], [], []>} : vector<64x256xbf16>, vector<256x768xbf16>, vector<64x768xf32> -> vector<64x768xf32>
    %c0_4 = arith.constant 0 : index
    %c0_5 = arith.constant 0 : index
    %6 = vector.load %arg6[%c0_4, %c0_5] : memref<1x768xf32, #tpu.memory_space<vmem>>, vector<1x768xf32>
    %7 = vector.broadcast %6 : vector<1x768xf32> to vector<64x768xf32>
    %8 = arith.addf %5, %7 : vector<64x768xf32>
    %9 = arith.truncf %8 : vector<64x768xf32> to vector<64x768xbf16>
    %10 = math.tanh %9 : vector<64x768xbf16>
    %c0_6 = arith.constant 0 : index
    %c0_7 = arith.constant 0 : index
    %11 = vector.load %arg7[%c0_6, %c0_7] : memref<64x768xbf16, #tpu.memory_space<vmem>>, vector<64x768xbf16>
    tpu.vector_store %arg7[%c0_6, %c0_7], %10 {strides = array<i32>} : memref<64x768xbf16, #tpu.memory_space<vmem>>, vector<64x768xbf16>,
    return
  }
  func.func @transform_0(%arg0: i32, %arg1: i32) -> (i32, i32) {
    %c0_i32 = arith.constant 0 : i32
    %c0_i32_0 = arith.constant 0 : i32
    return %arg0, %c0_i32 : i32, i32
  }
  func.func @transform_1(%arg0: i32, %arg1: i32) -> (i32, i32) {
    %c0_i32 = arith.constant 0 : i32
    %c0_i32_0 = arith.constant 0 : i32
    %c0_i32_1 = arith.constant 0 : i32
    return %c0_i32, %c0_i32_0 : i32, i32
  }
  func.func @transform_2(%arg0: i32, %arg1: i32) -> (i32, i32) {
    %c0_i32 = arith.constant 0 : i32
    %c0_i32_0 = arith.constant 0 : i32
    %c0_i32_1 = arith.constant 0 : i32
    return %c0_i32, %c0_i32_0 : i32, i32
  }
  func.func @transform_3(%arg0: i32, %arg1: i32) -> (i32, i32) {
    %c0_i32 = arith.constant 0 : i32
    %c0_i32_0 = arith.constant 0 : i32
    return %c0_i32, %arg1 : i32, i32
  }
  func.func @transform_4(%arg0: i32, %arg1: i32) -> (i32, i32) {
    %c0_i32 = arith.constant 0 : i32
    %c0_i32_0 = arith.constant 0 : i32
    return %c0_i32, %arg1 : i32, i32
  }
  func.func @transform_5(%arg0: i32, %arg1: i32) -> (i32, i32) {
    %c0_i32 = arith.constant 0 : i32
    return %arg0, %arg1 : i32, i32
  }
}

</mosaic_0001>

<llo_original>
// kernel: generator_forward.1
$region0: #{generator_forward.1}
  #allocation0 [shape = 'u32[]', space=smem, size = 0x4, offset = 0x4, fixed_abs, tag = 'smem constant byte address 0x4 - core index']
  #allocation1 [shape = 'u32[72,128]{1,0:T(1,128)}', space=vmem, size = 0x9000, scoped, tag = 'internal scratch']
  #allocation2 [shape = 'bf16[64,256]{1,0:T(8,128)(2,1)}', space=vmem, size = 0x8000, scoped, tag = 'scratch operand']
  %s0 = inlined_call_operand.vmem [shape: bf16[64,128], index: 0, kind: input, shape index: {}]
  %s1 = inlined_call_operand.vmem [shape: bf16[128,256], index: 1, kind: input, shape index: {}]
  %s2 = inlined_call_operand.vmem [shape: f32[1,256], index: 2, kind: input, shape index: {}]
  %s3 = inlined_call_operand.hbm [shape: bf16[256,768], index: 3, kind: input, shape index: {}]
  %s4 = inlined_call_operand.vmem [shape: f32[1,768], index: 4, kind: input, shape index: {}]
  %s5 = inlined_call_operand.vmem [shape: bf16[64,768], index: 5, kind: output, shape index: {}]
  %s6 = sld [smem:[#allocation0]]
  $region38: #{generator_forward.1} parent=0
    _
  %s8 = ssub.s32 1, %s6
  %s9 = scalar_select 0, %s8, %s6
  $region1: #{generator_forward.1} parent=0
    #allocation3 [shape = 'u8[393216]{0}', space=vmem, size = 0x60000, scoped, tag = 'input window, operand 3, single buffered']
    #allocation4 [shape = 's32[1]{0}', space=sflag, size = 0x4, scoped, tag = 'scoped memory for generator_forward.1']
    %10 = vsyncpa [#allocation4], 0
    // Predicated region
    $region2: #{generator_forward.1} parent=1 // pred_check
      _
    $region3: #{generator_forward.1} parent=1 // pred_check_branch
      %12 = sbr.rel (0) target = $region5
    $region4: #{generator_forward.1} parent=1 // pred_region
      _
    $region5: #{generator_forward.1} parent=1 // pred_fallthru
      _
    // Predicated region
    $region6: #{generator_forward.1} parent=1 // pred_check
      _
    $region7: #{generator_forward.1} parent=1 // pred_check_branch
      %14 = sbr.rel (0) target = $region9
    $region8: #{generator_forward.1} parent=1 // pred_region
      _
    $region9: #{generator_forward.1} parent=1 // pred_fallthru
      _
    // Predicated region
    $region10: #{generator_forward.1} parent=1 // pred_check
      _
    $region11: #{generator_forward.1} parent=1 // pred_check_branch
      %16 = sbr.rel (0) target = $region13
    $region12: #{generator_forward.1} parent=1 // pred_region
      _
    $region13: #{generator_forward.1} parent=1 // pred_fallthru
      _
    // Predicated region
    $region14: #{generator_forward.1} parent=1 // pred_check
      _
    $region15: #{generator_forward.1} parent=1 // pred_check_branch
      %18 = sbr.rel (0) target = $region17
    $region16: #{generator_forward.1} parent=1 // pred_region
      %20 = vsyncadd [#allocation4], 0
      %s21 = sshll.u32 %s3, 4
      %s22 = int_to_ptr.hbm [resolvable:$true] %s21
      %s23 = sshll.u32 [#allocation3], 4
      %s24 = int_to_ptr.vmem [resolvable:$true] %s23
      %29 = dma.hbm_to_vmem [thread:$0]  %s22, 12288, %s24, [#allocation4], 384, 384, 24
    $region17: #{generator_forward.1} parent=1 // pred_fallthru
      _
    // Predicated region
    $region18: #{generator_forward.1} parent=1 // pred_check
      _
    $region19: #{generator_forward.1} parent=1 // pred_check_branch
      %31 = sbr.rel (0) target = $region21
    $region20: #{generator_forward.1} parent=1 // pred_region
      _
    $region21: #{generator_forward.1} parent=1 // pred_fallthru
      _
    // Predicated region
    $region22: #{generator_forward.1} parent=1 // pred_check
      _
    $region23: #{generator_forward.1} parent=1 // pred_check_branch
      %33 = sbr.rel (0) target = $region25
    $region24: #{generator_forward.1} parent=1 // pred_region
      %35 = dma.done [#allocation4], 12288
    $region25: #{generator_forward.1} parent=1 // pred_fallthru
      _
    %p36 = scmp.eq.s32.totalorder 0, 0
    // Predicated region
    $region26: #{generator_forward.1} parent=1 // pred_check
      %p37 = pneg %p36
    $region27: #{generator_forward.1} parent=1 // pred_check_branch
      %39 = sbr.rel (%p37) target = $region29
    $region28: #{generator_forward.1} parent=1 // pred_region
      %v40 = vld [vmem:[%s0] sm:$0xf]
      %v41 = vld [vmem:[%s0 + $0x4] sm:$0xf]
      %v42 = vld [vmem:[%s0 + $0x8] sm:$0xf]
      %v43 = vld [vmem:[%s0 + $0xc] sm:$0xf]
      %v44 = vld [vmem:[%s0 + $0x10] sm:$0xf]
      %v45 = vld [vmem:[%s0 + $0x14] sm:$0xf]
      %v46 = vld [vmem:[%s0 + $0x18] sm:$0xf]
      %v47 = vld [vmem:[%s0 + $0x1c] sm:$0xf]
      %v48 = vld [vmem:[%s1] sm:$0xff]
      %v49 = vld [vmem:[%s1 + $0x8] sm:$0xff]
      %v50 = vld [vmem:[%s1 + $0x10] sm:$0xff]
      %v51 = vld [vmem:[%s1 + $0x18] sm:$0xff]
      %v52 = vld [vmem:[%s1 + $0x20] sm:$0xff]
      %v53 = vld [vmem:[%s1 + $0x28] sm:$0xff]
      %v54 = vld [vmem:[%s1 + $0x30] sm:$0xff]
      %v55 = vld [vmem:[%s1 + $0x38] sm:$0xff]
      %v56 = vld [vmem:[%s1 + $0x40] sm:$0xff]
      %v57 = vld [vmem:[%s1 + $0x48] sm:$0xff]
      %v58 = vld [vmem:[%s1 + $0x50] sm:$0xff]
      %v59 = vld [vmem:[%s1 + $0x58] sm:$0xff]
      %v60 = vld [vmem:[%s1 + $0x60] sm:$0xff]
      %v61 = vld [vmem:[%s1 + $0x68] sm:$0xff]
      %v62 = vld [vmem:[%s1 + $0x70] sm:$0xff]
      %v63 = vld [vmem:[%s1 + $0x78] sm:$0xff]
      %v64 = vld [vmem:[%s2] sm:$0x3]
      %v66 = vperm.slane %v64, 0
      %v67 = vperm.slane %v64, 1
      %v78 = vunpack.c.l.b16 %v40
      %v79 = vunpack.c.l.b16 %v41
      %v80 = vunpack.c.l.b16 %v42
      %v81 = vunpack.c.l.b16 %v43
      %v82 = vunpack.c.l.b16 %v44
      %v83 = vunpack.c.l.b16 %v45
      %v84 = vunpack.c.l.b16 %v46
      %v85 = vunpack.c.l.b16 %v47
      %v86 = vpack.c.b16 %v79, %v78
      %v87 = vpack.c.b16 %v81, %v80
      %v88 = vpack.c.b16 %v83, %v82
      %v89 = vpack.c.b16 %v85, %v84
      %v110 = vunpack.c.l.b16 %v48
      %v111 = vunpack.c.h.b16 %v48
      %v112 = vunpack.c.l.b16 %v49
      %v113 = vunpack.c.h.b16 %v49
      %v114 = vunpack.c.l.b16 %v50
      %v115 = vunpack.c.h.b16 %v50
      %v116 = vunpack.c.l.b16 %v51
      %v117 = vunpack.c.h.b16 %v51
      %v118 = vunpack.c.l.b16 %v52
      %v119 = vunpack.c.h.b16 %v52
      %v120 = vunpack.c.l.b16 %v53
      %v121 = vunpack.c.h.b16 %v53
      %v122 = vunpack.c.l.b16 %v54
      %v123 = vunpack.c.h.b16 %v54
      %v124 = vunpack.c.l.b16 %v55
      %v125 = vunpack.c.h.b16 %v55
      %v126 = vunpack.c.l.b16 %v56
      %v127 = vunpack.c.h.b16 %v56
      %v128 = vunpack.c.l.b16 %v57
      %v129 = vunpack.c.h.b16 %v57
      %v130 = vunpack.c.l.b16 %v58
      %v131 = vunpack.c.h.b16 %v58
      %v132 = vunpack.c.l.b16 %v59
      %v133 = vunpack.c.h.b16 %v59
      %v134 = vunpack.c.l.b16 %v60
      %v135 = vunpack.c.h.b16 %v60
      %v136 = vunpack.c.l.b16 %v61
      %v137 = vunpack.c.h.b16 %v61
      %v138 = vunpack.c.l.b16 %v62
      %v139 = vunpack.c.h.b16 %v62
      %v140 = vunpack.c.l.b16 %v63
      %v141 = vunpack.c.h.b16 %v63
      %v142 = vpack.c.b16 %v112, %v110
      %v143 = vpack.c.b16 %v113, %v111
      %v144 = vpack.c.b16 %v116, %v114
      %v145 = vpack.c.b16 %v117, %v115
      %v146 = vpack.c.b16 %v120, %v118
      %v147 = vpack.c.b16 %v121, %v119
      %v148 = vpack.c.b16 %v124, %v122
      %v149 = vpack.c.b16 %v125, %v123
      %v150 = vpack.c.b16 %v128, %v126
      %v151 = vpack.c.b16 %v129, %v127
      %v152 = vpack.c.b16 %v132, %v130
      %v153 = vpack.c.b16 %v133, %v131
      %v154 = vpack.c.b16 %v136, %v134
      %v155 = vpack.c.b16 %v137, %v135
      %v156 = vpack.c.b16 %v140, %v138
      %v157 = vpack.c.b16 %v141, %v139
      %174 = vmatpush.bf16.msra.mxu0 %v156
      %175 = vmatpush.bf16.msra.mxu0 %v154
      %176 = vmatpush.bf16.msra.mxu0 %v152
      %177 = vmatpush.bf16.msra.mxu0 %v150
      %178 = vmatpush.bf16.msra.mxu0 %v148
      %179 = vmatpush.bf16.msra.mxu0 %v146
      %180 = vmatpush.bf16.msra.mxu0 %v144
      %181 = vmatpush.bf16.msra.mxu0 %v142
      %182 = vmatmul.bf16.gmra.mxu0 %v86
      %v183 = vpop.f32.mrf.mxu0
      %v184 = vadd.f32 %v66, %v183
      %v185 = vpop.f32.mrf.mxu0
      %v186 = vadd.f32 %v66, %v185
      %187 = vmatmul.bf16.gmra.mxu0 %v87
      %v188 = vpop.f32.mrf.mxu0
      %v189 = vadd.f32 %v66, %v188
      %v190 = vpop.f32.mrf.mxu0
      %v191 = vadd.f32 %v66, %v190
      %192 = vmatmul.bf16.gmra.mxu0 %v88
      %v193 = vpop.f32.mrf.mxu0
      %v194 = vadd.f32 %v66, %v193
      %v195 = vpop.f32.mrf.mxu0
      %v196 = vadd.f32 %v66, %v195
      %197 = vmatmul.bf16.gmra.mxu0 %v89
      %v198 = vpop.f32.mrf.mxu0
      %v199 = vadd.f32 %v66, %v198
      %v200 = vpop.f32.mrf.mxu0
      %v201 = vadd.f32 %v66, %v200
      %202 = vdwg.mxu0
      %203 = vmatpush.bf16.msra.mxu0 %v157
      %204 = vmatpush.bf16.msra.mxu0 %v155
      %205 = vmatpush.bf16.msra.mxu0 %v153
      %206 = vmatpush.bf16.msra.mxu0 %v151
      %207 = vmatpush.bf16.msra.mxu0 %v149
      %208 = vmatpush.bf16.msra.mxu0 %v147
      %209 = vmatpush.bf16.msra.mxu0 %v145
      %210 = vmatpush.bf16.msra.mxu0 %v143
      %211 = vmatmul.bf16.gmra.mxu0 %v86
      %v212 = vpop.f32.mrf.mxu0
      %v213 = vadd.f32 %v67, %v212
      %v214 = vpop.f32.mrf.mxu0
      %v215 = vadd.f32 %v67, %v214
      %216 = vmatmul.bf16.gmra.mxu0 %v87
      %v217 = vpop.f32.mrf.mxu0
      %v218 = vadd.f32 %v67, %v217
      %v219 = vpop.f32.mrf.mxu0
      %v220 = vadd.f32 %v67, %v219
      %221 = vmatmul.bf16.gmra.mxu0 %v88
      %v222 = vpop.f32.mrf.mxu0
      %v223 = vadd.f32 %v67, %v222
      %v224 = vpop.f32.mrf.mxu0
      %v225 = vadd.f32 %v67, %v224
      %226 = vmatmul.bf16.gmra.mxu0 %v89
      %v227 = vpop.f32.mrf.mxu0
      %v228 = vadd.f32 %v67, %v227
      %v229 = vpop.f32.mrf.mxu0
      %v230 = vadd.f32 %v67, %v229
      %231 = vdwg.mxu0
      %v232 = vmax.f32 %v184, 0.0
      %v233 = vmax.f32 %v213, 0.0
      %v234 = vmax.f32 %v186, 0.0
      %v235 = vmax.f32 %v215, 0.0
      %v236 = vmax.f32 %v189, 0.0
      %v237 = vmax.f32 %v218, 0.0
      %v238 = vmax.f32 %v191, 0.0
      %v239 = vmax.f32 %v220, 0.0
      %v240 = vmax.f32 %v194, 0.0
      %v241 = vmax.f32 %v223, 0.0
      %v242 = vmax.f32 %v196, 0.0
      %v243 = vmax.f32 %v225, 0.0
      %v244 = vmax.f32 %v199, 0.0
      %v245 = vmax.f32 %v228, 0.0
      %v246 = vmax.f32 %v201, 0.0
      %v247 = vmax.f32 %v230, 0.0
      %v248 = vpack.c.bf16 %v233, %v232
      %v249 = vpack.c.bf16 %v235, %v234
      %v250 = vpack.c.bf16 %v237, %v236
      %v251 = vpack.c.bf16 %v239, %v238
      %v252 = vpack.c.bf16 %v241, %v240
      %v253 = vpack.c.bf16 %v243, %v242
      %v254 = vpack.c.bf16 %v245, %v244
      %v255 = vpack.c.bf16 %v247, %v246
      %256 = vst [vmem:[#allocation2] sm:$0xff] %v248
      %257 = vst [vmem:[#allocation2 + $0x8] sm:$0xff] %v249
      %258 = vst [vmem:[#allocation2 + $0x10] sm:$0xff] %v250
      %259 = vst [vmem:[#allocation2 + $0x18] sm:$0xff] %v251
      %260 = vst [vmem:[#allocation2 + $0x20] sm:$0xff] %v252
      %261 = vst [vmem:[#allocation2 + $0x28] sm:$0xff] %v253
      %262 = vst [vmem:[#allocation2 + $0x30] sm:$0xff] %v254
      %263 = vst [vmem:[#allocation2 + $0x38] sm:$0xff] %v255
    $region29: #{generator_forward.1} parent=1 // pred_fallthru
      _
    %v264 = vld [vmem:[#allocation2] sm:$0xff]
    %v265 = vld [vmem:[#allocation2 + $0x8] sm:$0xff]
    %v266 = vld [vmem:[#allocation2 + $0x10] sm:$0xff]
    %v267 = vld [vmem:[#allocation2 + $0x18] sm:$0xff]
    %v268 = vld [vmem:[#allocation2 + $0x20] sm:$0xff]
    %v269 = vld [vmem:[#allocation2 + $0x28] sm:$0xff]
    %v270 = vld [vmem:[#allocation2 + $0x30] sm:$0xff]
    %v271 = vld [vmem:[#allocation2 + $0x38] sm:$0xff]
    %v272 = vld [vmem:[#allocation3] sm:$0xff]
    %v273 = vld [vmem:[#allocation3 + $0x8] sm:$0xff]
    %v274 = vld [vmem:[#allocation3 + $0x10] sm:$0xff]
    %v275 = vld [vmem:[#allocation3 + $0x18] sm:$0xff]
    %v276 = vld [vmem:[#allocation3 + $0x20] sm:$0xff]
    %v277 = vld [vmem:[#allocation3 + $0x28] sm:$0xff]
    %v278 = vld [vmem:[#allocation3 + $0x30] sm:$0xff]
    %v279 = vld [vmem:[#allocation3 + $0x38] sm:$0xff]
    %v280 = vld [vmem:[#allocation3 + $0x40] sm:$0xff]
    %v281 = vld [vmem:[#allocation3 + $0x48] sm:$0xff]
    %v282 = vld [vmem:[#allocation3 + $0x50] sm:$0xff]
    %v283 = vld [vmem:[#allocation3 + $0x58] sm:$0xff]
    %v284 = vld [vmem:[#allocation3 + $0x60] sm:$0xff]
    %v285 = vld [vmem:[#allocation3 + $0x68] sm:$0xff]
    %v286 = vld [vmem:[#allocation3 + $0x70] sm:$0xff]
    %v287 = vld [vmem:[#allocation3 + $0x78] sm:$0xff]
    %v288 = vld [vmem:[#allocation3 + $0x80] sm:$0xff]
    %v289 = vld [vmem:[#allocation3 + $0x88] sm:$0xff]
    %v290 = vld [vmem:[#allocation3 + $0x90] sm:$0xff]
    %v291 = vld [vmem:[#allocation3 + $0x98] sm:$0xff]
    %v292 = vld [vmem:[#allocation3 + $0xa0] sm:$0xff]
    %v293 = vld [vmem:[#allocation3 + $0xa8] sm:$0xff]
    %v294 = vld [vmem:[#allocation3 + $0xb0] sm:$0xff]
    %v295 = vld [vmem:[#allocation3 + $0xb8] sm:$0xff]
    %v296 = vld [vmem:[#allocation3 + $0xc0] sm:$0xff]
    %v297 = vld [vmem:[#allocation3 + $0xc8] sm:$0xff]
    %v298 = vld [vmem:[#allocation3 + $0xd0] sm:$0xff]
    %v299 = vld [vmem:[#allocation3 + $0xd8] sm:$0xff]
    %v300 = vld [vmem:[#allocation3 + $0xe0] sm:$0xff]
    %v301 = vld [vmem:[#allocation3 + $0xe8] sm:$0xff]
    %v302 = vld [vmem:[#allocation3 + $0xf0] sm:$0xff]
    %v303 = vld [vmem:[#allocation3 + $0xf8] sm:$0xff]
    %v304 = vld [vmem:[#allocation3 + $0x100] sm:$0xff]
    %v305 = vld [vmem:[#allocation3 + $0x108] sm:$0xff]
    %v306 = vld [vmem:[#allocation3 + $0x110] sm:$0xff]
    %v307 = vld [vmem:[#allocation3 + $0x118] sm:$0xff]
    %v308 = vld [vmem:[#allocation3 + $0x120] sm:$0xff]
    %v309 = vld [vmem:[#allocation3 + $0x128] sm:$0xff]
    %v310 = vld [vmem:[#allocation3 + $0x130] sm:$0xff]
    %v311 = vld [vmem:[#allocation3 + $0x138] sm:$0xff]
    %v312 = vld [vmem:[#allocation3 + $0x140] sm:$0xff]
    %v313 = vld [vmem:[#allocation3 + $0x148] sm:$0xff]
    %v314 = vld [vmem:[#allocation3 + $0x150] sm:$0xff]
    %v315 = vld [vmem:[#allocation3 + $0x158] sm:$0xff]
    %v316 = vld [vmem:[#allocation3 + $0x160] sm:$0xff]
    %v317 = vld [vmem:[#allocation3 + $0x168] sm:$0xff]
    %v318 = vld [vmem:[#allocation3 + $0x170] sm:$0xff]
    %v319 = vld [vmem:[#allocation3 + $0x178] sm:$0xff]
    %v320 = vld [vmem:[#allocation3 + $0x180] sm:$0xff]
    %v321 = vld [vmem:[#allocation3 + $0x188] sm:$0xff]
    %v322 = vld [vmem:[#allocation3 + $0x190] sm:$0xff]
    %v323 = vld [vmem:[#allocation3 + $0x198] sm:$0xff]
    %v324 = vld [vmem:[#allocation3 + $0x1a0] sm:$0xff]
    %v325 = vld [vmem:[#allocation3 + $0x1a8] sm:$0xff]
    %v326 = vld [vmem:[#allocation3 + $0x1b0] sm:$0xff]
    %v327 = vld [vmem:[#allocation3 + $0x1b8] sm:$0xff]
    %v328 = vld [vmem:[#allocation3 + $0x1c0] sm:$0xff]
    %v329 = vld [vmem:[#allocation3 + $0x1c8] sm:$0xff]
    %v330 = vld [vmem:[#allocation3 + $0x1d0] sm:$0xff]
    %v331 = vld [vmem:[#allocation3 + $0x1d8] sm:$0xff]
    %v332 = vld [vmem:[#allocation3 + $0x1e0] sm:$0xff]
    %v333 = vld [vmem:[#allocation3 + $0x1e8] sm:$0xff]
    %v334 = vld [vmem:[#allocation3 + $0x1f0] sm:$0xff]
    %v335 = vld [vmem:[#allocation3 + $0x1f8] sm:$0xff]
    %v336 = vld [vmem:[#allocation3 + $0x200] sm:$0xff]
    %v337 = vld [vmem:[#allocation3 + $0x208] sm:$0xff]
    %v338 = vld [vmem:[#allocation3 + $0x210] sm:$0xff]
    %v339 = vld [vmem:[#allocation3 + $0x218] sm:$0xff]
    %v340 = vld [vmem:[#allocation3 + $0x220] sm:$0xff]
    %v341 = vld [vmem:[#allocation3 + $0x228] sm:$0xff]
    %v342 = vld [vmem:[#allocation3 + $0x230] sm:$0xff]
    %v343 = vld [vmem:[#allocation3 + $0x238] sm:$0xff]
    %v344 = vld [vmem:[#allocation3 + $0x240] sm:$0xff]
    %v345 = vld [vmem:[#allocation3 + $0x248] sm:$0xff]
    %v346 = vld [vmem:[#allocation3 + $0x250] sm:$0xff]
    %v347 = vld [vmem:[#allocation3 + $0x258] sm:$0xff]
    %v348 = vld [vmem:[#allocation3 + $0x260] sm:$0xff]
    %v349 = vld [vmem:[#allocation3 + $0x268] sm:$0xff]
    %v350 = vld [vmem:[#allocation3 + $0x270] sm:$0xff]
    %v351 = vld [vmem:[#allocation3 + $0x278] sm:$0xff]
    %v352 = vld [vmem:[#allocation3 + $0x280] sm:$0xff]
    %v353 = vld [vmem:[#allocation3 + $0x288] sm:$0xff]
    %v354 = vld [vmem:[#allocation3 + $0x290] sm:$0xff]
    %v355 = vld [vmem:[#allocation3 + $0x298] sm:$0xff]
    %v356 = vld [vmem:[#allocation3 + $0x2a0] sm:$0xff]
    %v357 = vld [vmem:[#allocation3 + $0x2a8] sm:$0xff]
    %v358 = vld [vmem:[#allocation3 + $0x2b0] sm:$0xff]
    %v359 = vld [vmem:[#allocation3 + $0x2b8] sm:$0xff]
    %v360 = vld [vmem:[#allocation3 + $0x2c0] sm:$0xff]
    %v361 = vld [vmem:[#allocation3 + $0x2c8] sm:$0xff]
    %v362 = vld [vmem:[#allocation3 + $0x2d0] sm:$0xff]
    %v363 = vld [vmem:[#allocation3 + $0x2d8] sm:$0xff]
    %v364 = vld [vmem:[#allocation3 + $0x2e0] sm:$0xff]
    %v365 = vld [vmem:[#allocation3 + $0x2e8] sm:$0xff]
    %v366 = vld [vmem:[#allocation3 + $0x2f0] sm:$0xff]
    %v367 = vld [vmem:[#allocation3 + $0x2f8] sm:$0xff]
    %v368 = vld [vmem:[%s4] sm:$0x3f]
    %v370 = vperm.slane %v368, 0
    %v371 = vperm.slane %v368, 1
    %v372 = vperm.slane %v368, 2
    %v373 = vperm.slane %v368, 3
    %v374 = vperm.slane %v368, 4
    %v375 = vperm.slane %v368, 5
    %v390 = vunpack.c.l.b16 %v264
    %v391 = vunpack.c.h.b16 %v264
    %v392 = vunpack.c.l.b16 %v265
    %v393 = vunpack.c.h.b16 %v265
    %v394 = vunpack.c.l.b16 %v266
    %v395 = vunpack.c.h.b16 %v266
    %v396 = vunpack.c.l.b16 %v267
    %v397 = vunpack.c.h.b16 %v267
    %v398 = vunpack.c.l.b16 %v268
    %v399 = vunpack.c.h.b16 %v268
    %v400 = vunpack.c.l.b16 %v269
    %v401 = vunpack.c.h.b16 %v269
    %v402 = vunpack.c.l.b16 %v270
    %v403 = vunpack.c.h.b16 %v270
    %v404 = vunpack.c.l.b16 %v271
    %v405 = vunpack.c.h.b16 %v271
    %v406 = vpack.c.b16 %v392, %v390
    %v407 = vpack.c.b16 %v393, %v391
    %v408 = vpack.c.b16 %v396, %v394
    %v409 = vpack.c.b16 %v397, %v395
    %v410 = vpack.c.b16 %v400, %v398
    %v411 = vpack.c.b16 %v401, %v399
    %v412 = vpack.c.b16 %v404, %v402
    %v413 = vpack.c.b16 %v405, %v403
    %v518 = vunpack.c.l.b16 %v272
    %v519 = vunpack.c.h.b16 %v272
    %v520 = vunpack.c.l.b16 %v273
    %v521 = vunpack.c.h.b16 %v273
    %v522 = vunpack.c.l.b16 %v274
    %v523 = vunpack.c.h.b16 %v274
    %v524 = vunpack.c.l.b16 %v275
    %v525 = vunpack.c.h.b16 %v275
    %v526 = vunpack.c.l.b16 %v276
    %v527 = vunpack.c.h.b16 %v276
    %v528 = vunpack.c.l.b16 %v277
    %v529 = vunpack.c.h.b16 %v277
    %v530 = vunpack.c.l.b16 %v278
    %v531 = vunpack.c.h.b16 %v278
    %v532 = vunpack.c.l.b16 %v279
    %v533 = vunpack.c.h.b16 %v279
    %v534 = vunpack.c.l.b16 %v280
    %v535 = vunpack.c.h.b16 %v280
    %v536 = vunpack.c.l.b16 %v281
    %v537 = vunpack.c.h.b16 %v281
    %v538 = vunpack.c.l.b16 %v282
    %v539 = vunpack.c.h.b16 %v282
    %v540 = vunpack.c.l.b16 %v283
    %v541 = vunpack.c.h.b16 %v283
    %v542 = vunpack.c.l.b16 %v284
    %v543 = vunpack.c.h.b16 %v284
    %v544 = vunpack.c.l.b16 %v285
    %v545 = vunpack.c.h.b16 %v285
    %v546 = vunpack.c.l.b16 %v286
    %v547 = vunpack.c.h.b16 %v286
    %v548 = vunpack.c.l.b16 %v287
    %v549 = vunpack.c.h.b16 %v287
    %v550 = vunpack.c.l.b16 %v288
    %v551 = vunpack.c.h.b16 %v288
    %v552 = vunpack.c.l.b16 %v289
    %v553 = vunpack.c.h.b16 %v289
    %v554 = vunpack.c.l.b16 %v290
    %v555 = vunpack.c.h.b16 %v290
    %v556 = vunpack.c.l.b16 %v291
    %v557 = vunpack.c.h.b16 %v291
    %v558 = vunpack.c.l.b16 %v292
    %v559 = vunpack.c.h.b16 %v292
    %v560 = vunpack.c.l.b16 %v293
    %v561 = vunpack.c.h.b16 %v293
    %v562 = vunpack.c.l.b16 %v294
    %v563 = vunpack.c.h.b16 %v294
    %v564 = vunpack.c.l.b16 %v295
    %v565 = vunpack.c.h.b16 %v295
    %v566 = vunpack.c.l.b16 %v296
    %v567 = vunpack.c.h.b16 %v296
    %v568 = vunpack.c.l.b16 %v297
    %v569 = vunpack.c.h.b16 %v297
    %v570 = vunpack.c.l.b16 %v298
    %v571 = vunpack.c.h.b16 %v298
    %v572 = vunpack.c.l.b16 %v299
    %v573 = vunpack.c.h.b16 %v299
    %v574 = vunpack.c.l.b16 %v300
    %v575 = vunpack.c.h.b16 %v300
    %v576 = vunpack.c.l.b16 %v301
    %v577 = vunpack.c.h.b16 %v301
    %v578 = vunpack.c.l.b16 %v302
    %v579 = vunpack.c.h.b16 %v302
    %v580 = vunpack.c.l.b16 %v303
    %v581 = vunpack.c.h.b16 %v303
    %v582 = vunpack.c.l.b16 %v304
    %v583 = vunpack.c.h.b16 %v304
    %v584 = vunpack.c.l.b16 %v305
    %v585 = vunpack.c.h.b16 %v305
    %v586 = vunpack.c.l.b16 %v306
    %v587 = vunpack.c.h.b16 %v306
    %v588 = vunpack.c.l.b16 %v307
    %v589 = vunpack.c.h.b16 %v307
    %v590 = vunpack.c.l.b16 %v308
    %v591 = vunpack.c.h.b16 %v308
    %v592 = vunpack.c.l.b16 %v309
    %v593 = vunpack.c.h.b16 %v309
    %v594 = vunpack.c.l.b16 %v310
    %v595 = vunpack.c.h.b16 %v310
    %v596 = vunpack.c.l.b16 %v311
    %v597 = vunpack.c.h.b16 %v311
    %v598 = vunpack.c.l.b16 %v312
    %v599 = vunpack.c.h.b16 %v312
    %v600 = vunpack.c.l.b16 %v313
    %v601 = vunpack.c.h.b16 %v313
    %v602 = vunpack.c.l.b16 %v314
    %v603 = vunpack.c.h.b16 %v314
    %v604 = vunpack.c.l.b16 %v315
    %v605 = vunpack.c.h.b16 %v315
    %v606 = vunpack.c.l.b16 %v316
    %v607 = vunpack.c.h.b16 %v316
    %v608 = vunpack.c.l.b16 %v317
    %v609 = vunpack.c.h.b16 %v317
    %v610 = vunpack.c.l.b16 %v318
    %v611 = vunpack.c.h.b16 %v318
    %v612 = vunpack.c.l.b16 %v319
    %v613 = vunpack.c.h.b16 %v319
    %v614 = vunpack.c.l.b16 %v320
    %v615 = vunpack.c.h.b16 %v320
    %v616 = vunpack.c.l.b16 %v321
    %v617 = vunpack.c.h.b16 %v321
    %v618 = vunpack.c.l.b16 %v322
    %v619 = vunpack.c.h.b16 %v322
    %v620 = vunpack.c.l.b16 %v323
    %v621 = vunpack.c.h.b16 %v323
    %v622 = vunpack.c.l.b16 %v324
    %v623 = vunpack.c.h.b16 %v324
    %v624 = vunpack.c.l.b16 %v325
    %v625 = vunpack.c.h.b16 %v325
    %v626 = vunpack.c.l.b16 %v326
    %v627 = vunpack.c.h.b16 %v326
    %v628 = vunpack.c.l.b16 %v327
    %v629 = vunpack.c.h.b16 %v327
    %v630 = vunpack.c.l.b16 %v328
    %v631 = vunpack.c.h.b16 %v328
    %v632 = vunpack.c.l.b16 %v329
    %v633 = vunpack.c.h.b16 %v329
    %v634 = vunpack.c.l.b16 %v330
    %v635 = vunpack.c.h.b16 %v330
    %v636 = vunpack.c.l.b16 %v331
    %v637 = vunpack.c.h.b16 %v331
    %v638 = vunpack.c.l.b16 %v332
    %v639 = vunpack.c.h.b16 %v332
    %v640 = vunpack.c.l.b16 %v333
    %v641 = vunpack.c.h.b16 %v333
    %v642 = vunpack.c.l.b16 %v334
    %v643 = vunpack.c.h.b16 %v334
    %v644 = vunpack.c.l.b16 %v335
    %v645 = vunpack.c.h.b16 %v335
    %v646 = vunpack.c.l.b16 %v336
    %v647 = vunpack.c.h.b16 %v336
    %v648 = vunpack.c.l.b16 %v337
    %v649 = vunpack.c.h.b16 %v337
    %v650 = vunpack.c.l.b16 %v338
    %v651 = vunpack.c.h.b16 %v338
    %v652 = vunpack.c.l.b16 %v339
    %v653 = vunpack.c.h.b16 %v339
    %v654 = vunpack.c.l.b16 %v340
    %v655 = vunpack.c.h.b16 %v340
    %v656 = vunpack.c.l.b16 %v341
    %v657 = vunpack.c.h.b16 %v341
    %v658 = vunpack.c.l.b16 %v342
    %v659 = vunpack.c.h.b16 %v342
    %v660 = vunpack.c.l.b16 %v343
    %v661 = vunpack.c.h.b16 %v343
    %v662 = vunpack.c.l.b16 %v344
    %v663 = vunpack.c.h.b16 %v344
    %v664 = vunpack.c.l.b16 %v345
    %v665 = vunpack.c.h.b16 %v345
    %v666 = vunpack.c.l.b16 %v346
    %v667 = vunpack.c.h.b16 %v346
    %v668 = vunpack.c.l.b16 %v347
    %v669 = vunpack.c.h.b16 %v347
    %v670 = vunpack.c.l.b16 %v348
    %v671 = vunpack.c.h.b16 %v348
    %v672 = vunpack.c.l.b16 %v349
    %v673 = vunpack.c.h.b16 %v349
    %v674 = vunpack.c.l.b16 %v350
    %v675 = vunpack.c.h.b16 %v350
    %v676 = vunpack.c.l.b16 %v351
    %v677 = vunpack.c.h.b16 %v351
    %v678 = vunpack.c.l.b16 %v352
    %v679 = vunpack.c.h.b16 %v352
    %v680 = vunpack.c.l.b16 %v353
    %v681 = vunpack.c.h.b16 %v353
    %v682 = vunpack.c.l.b16 %v354
    %v683 = vunpack.c.h.b16 %v354
    %v684 = vunpack.c.l.b16 %v355
    %v685 = vunpack.c.h.b16 %v355
    %v686 = vunpack.c.l.b16 %v356
    %v687 = vunpack.c.h.b16 %v356
    %v688 = vunpack.c.l.b16 %v357
    %v689 = vunpack.c.h.b16 %v357
    %v690 = vunpack.c.l.b16 %v358
    %v691 = vunpack.c.h.b16 %v358
    %v692 = vunpack.c.l.b16 %v359
    %v693 = vunpack.c.h.b16 %v359
    %v694 = vunpack.c.l.b16 %v360
    %v695 = vunpack.c.h.b16 %v360
    %v696 = vunpack.c.l.b16 %v361
    %v697 = vunpack.c.h.b16 %v361
    %v698 = vunpack.c.l.b16 %v362
    %v699 = vunpack.c.h.b16 %v362
    %v700 = vunpack.c.l.b16 %v363
    %v701 = vunpack.c.h.b16 %v363
    %v702 = vunpack.c.l.b16 %v364
    %v703 = vunpack.c.h.b16 %v364
    %v704 = vunpack.c.l.b16 %v365
    %v705 = vunpack.c.h.b16 %v365
    %v706 = vunpack.c.l.b16 %v366
    %v707 = vunpack.c.h.b16 %v366
    %v708 = vunpack.c.l.b16 %v367
    %v709 = vunpack.c.h.b16 %v367
    %v710 = vpack.c.b16 %v524, %v518
    %v711 = vpack.c.b16 %v525, %v519
    %v712 = vpack.c.b16 %v526, %v520
    %v713 = vpack.c.b16 %v527, %v521
    %v714 = vpack.c.b16 %v528, %v522
    %v715 = vpack.c.b16 %v529, %v523
    %v716 = vpack.c.b16 %v536, %v530
    %v717 = vpack.c.b16 %v537, %v531
    %v718 = vpack.c.b16 %v538, %v532
    %v719 = vpack.c.b16 %v539, %v533
    %v720 = vpack.c.b16 %v540, %v534
    %v721 = vpack.c.b16 %v541, %v535
    %v722 = vpack.c.b16 %v548, %v542
    %v723 = vpack.c.b16 %v549, %v543
    %v724 = vpack.c.b16 %v550, %v544
    %v725 = vpack.c.b16 %v551, %v545
    %v726 = vpack.c.b16 %v552, %v546
    %v727 = vpack.c.b16 %v553, %v547
    %v728 = vpack.c.b16 %v560, %v554
    %v729 = vpack.c.b16 %v561, %v555
    %v730 = vpack.c.b16 %v562, %v556
    %v731 = vpack.c.b16 %v563, %v557
    %v732 = vpack.c.b16 %v564, %v558
    %v733 = vpack.c.b16 %v565, %v559
    %v734 = vpack.c.b16 %v572, %v566
    %v735 = vpack.c.b16 %v573, %v567
    %v736 = vpack.c.b16 %v574, %v568
    %v737 = vpack.c.b16 %v575, %v569
    %v738 = vpack.c.b16 %v576, %v570
    %v739 = vpack.c.b16 %v577, %v571
    %v740 = vpack.c.b16 %v584, %v578
    %v741 = vpack.c.b16 %v585, %v579
    %v742 = vpack.c.b16 %v586, %v580
    %v743 = vpack.c.b16 %v587, %v581
    %v744 = vpack.c.b16 %v588, %v582
    %v745 = vpack.c.b16 %v589, %v583
    %v746 = vpack.c.b16 %v596, %v590
    %v747 = vpack.c.b16 %v597, %v591
    %v748 = vpack.c.b16 %v598, %v592
    %v749 = vpack.c.b16 %v599, %v593
    %v750 = vpack.c.b16 %v600, %v594
    %v751 = vpack.c.b16 %v601, %v595
    %v752 = vpack.c.b16 %v608, %v602
    %v753 = vpack.c.b16 %v609, %v603
    %v754 = vpack.c.b16 %v610, %v604
    %v755 = vpack.c.b16 %v611, %v605
    %v756 = vpack.c.b16 %v612, %v606
    %v757 = vpack.c.b16 %v613, %v607
    %v758 = vpack.c.b16 %v620, %v614
    %v759 = vpack.c.b16 %v621, %v615
    %v760 = vpack.c.b16 %v622, %v616
    %v761 = vpack.c.b16 %v623, %v617
    %v762 = vpack.c.b16 %v624, %v618
    %v763 = vpack.c.b16 %v625, %v619
    %v764 = vpack.c.b16 %v632, %v626
    %v765 = vpack.c.b16 %v633, %v627
    %v766 = vpack.c.b16 %v634, %v628
    %v767 = vpack.c.b16 %v635, %v629
    %v768 = vpack.c.b16 %v636, %v630
    %v769 = vpack.c.b16 %v637, %v631
    %v770 = vpack.c.b16 %v644, %v638
    %v771 = vpack.c.b16 %v645, %v639
    %v772 = vpack.c.b16 %v646, %v640
    %v773 = vpack.c.b16 %v647, %v641
    %v774 = vpack.c.b16 %v648, %v642
    %v775 = vpack.c.b16 %v649, %v643
    %v776 = vpack.c.b16 %v656, %v650
    %v777 = vpack.c.b16 %v657, %v651
    %v778 = vpack.c.b16 %v658, %v652
    %v779 = vpack.c.b16 %v659, %v653
    %v780 = vpack.c.b16 %v660, %v654
    %v781 = vpack.c.b16 %v661, %v655
    %v782 = vpack.c.b16 %v668, %v662
    %v783 = vpack.c.b16 %v669, %v663
    %v784 = vpack.c.b16 %v670, %v664
    %v785 = vpack.c.b16 %v671, %v665
    %v786 = vpack.c.b16 %v672, %v666
    %v787 = vpack.c.b16 %v673, %v667
    %v788 = vpack.c.b16 %v680, %v674
    %v789 = vpack.c.b16 %v681, %v675
    %v790 = vpack.c.b16 %v682, %v676
    %v791 = vpack.c.b16 %v683, %v677
    %v792 = vpack.c.b16 %v684, %v678
    %v793 = vpack.c.b16 %v685, %v679
    %v794 = vpack.c.b16 %v692, %v686
    %v795 = vpack.c.b16 %v693, %v687
    %v796 = vpack.c.b16 %v694, %v688
    %v797 = vpack.c.b16 %v695, %v689
    %v798 = vpack.c.b16 %v696, %v690
    %v799 = vpack.c.b16 %v697, %v691
    %v800 = vpack.c.b16 %v704, %v698
    %v801 = vpack.c.b16 %v705, %v699
    %v802 = vpack.c.b16 %v706, %v700
    %v803 = vpack.c.b16 %v707, %v701
    %v804 = vpack.c.b16 %v708, %v702
    %v805 = vpack.c.b16 %v709, %v703
    %902 = vmatpush.bf16.msra.mxu0 %v752
    %903 = vmatpush.bf16.msra.mxu0 %v746
    %904 = vmatpush.bf16.msra.mxu0 %v740
    %905 = vmatpush.bf16.msra.mxu0 %v734
    %906 = vmatpush.bf16.msra.mxu0 %v728
    %907 = vmatpush.bf16.msra.mxu0 %v722
    %908 = vmatpush.bf16.msra.mxu0 %v716
    %909 = vmatpush.bf16.msra.mxu0 %v710
    %910 = vmatmul.bf16.gmra.mxu0 %v406
    %v911 = vpop.f32.mrf.mxu0
    %v912 = vadd.f32 %v370, %v911
    %v913 = vpop.f32.mrf.mxu0
    %v914 = vadd.f32 %v370, %v913
    %915 = vmatmul.bf16.gmra.mxu0 %v408
    %v916 = vpop.f32.mrf.mxu0
    %v917 = vadd.f32 %v370, %v916
    %v918 = vpop.f32.mrf.mxu0
    %v919 = vadd.f32 %v370, %v918
    %920 = vmatmul.bf16.gmra.mxu0 %v410
    %v921 = vpop.f32.mrf.mxu0
    %v922 = vadd.f32 %v370, %v921
    %v923 = vpop.f32.mrf.mxu0
    %v924 = vadd.f32 %v370, %v923
    %925 = vmatmul.bf16.gmra.mxu0 %v412
    %v926 = vpop.f32.mrf.mxu0
    %v927 = vadd.f32 %v370, %v926
    %v928 = vpop.f32.mrf.mxu0
    %v929 = vadd.f32 %v370, %v928
    %930 = vdwg.mxu0
    %931 = vmatpush.bf16.msra.mxu0 %v800
    %932 = vmatpush.bf16.msra.mxu0 %v794
    %933 = vmatpush.bf16.msra.mxu0 %v788
    %934 = vmatpush.bf16.msra.mxu0 %v782
    %935 = vmatpush.bf16.msra.mxu0 %v776
    %936 = vmatpush.bf16.msra.mxu0 %v770
    %937 = vmatpush.bf16.msra.mxu0 %v764
    %938 = vmatpush.bf16.msra.mxu0 %v758
    %939 = vmatmul.bf16.gmra.mxu0 %v407
    %v940 = vpop.f32.mrf.mxu0
    %v941 = vadd.f32 %v912, %v940
    %v942 = vpop.f32.mrf.mxu0
    %v943 = vadd.f32 %v914, %v942
    %944 = vmatmul.bf16.gmra.mxu0 %v409
    %v945 = vpop.f32.mrf.mxu0
    %v946 = vadd.f32 %v917, %v945
    %v947 = vpop.f32.mrf.mxu0
    %v948 = vadd.f32 %v919, %v947
    %949 = vmatmul.bf16.gmra.mxu0 %v411
    %v950 = vpop.f32.mrf.mxu0
    %v951 = vadd.f32 %v922, %v950
    %v952 = vpop.f32.mrf.mxu0
    %v953 = vadd.f32 %v924, %v952
    %954 = vmatmul.bf16.gmra.mxu0 %v413
    %v955 = vpop.f32.mrf.mxu0
    %v956 = vadd.f32 %v927, %v955
    %v957 = vpop.f32.mrf.mxu0
    %v958 = vadd.f32 %v929, %v957
    %959 = vdwg.mxu0
    %960 = vmatpush.bf16.msra.mxu0 %v753
    %961 = vmatpush.bf16.msra.mxu0 %v747
    %962 = vmatpush.bf16.msra.mxu0 %v741
    %963 = vmatpush.bf16.msra.mxu0 %v735
    %964 = vmatpush.bf16.msra.mxu0 %v729
    %965 = vmatpush.bf16.msra.mxu0 %v723
    %966 = vmatpush.bf16.msra.mxu0 %v717
    %967 = vmatpush.bf16.msra.mxu0 %v711
    %968 = vmatmul.bf16.gmra.mxu0 %v406
    %v969 = vpop.f32.mrf.mxu0
    %v970 = vadd.f32 %v371, %v969
    %v971 = vpop.f32.mrf.mxu0
    %v972 = vadd.f32 %v371, %v971
    %973 = vmatmul.bf16.gmra.mxu0 %v408
    %v974 = vpop.f32.mrf.mxu0
    %v975 = vadd.f32 %v371, %v974
    %v976 = vpop.f32.mrf.mxu0
    %v977 = vadd.f32 %v371, %v976
    %978 = vmatmul.bf16.gmra.mxu0 %v410
    %v979 = vpop.f32.mrf.mxu0
    %v980 = vadd.f32 %v371, %v979
    %v981 = vpop.f32.mrf.mxu0
    %v982 = vadd.f32 %v371, %v981
    %983 = vmatmul.bf16.gmra.mxu0 %v412
    %v984 = vpop.f32.mrf.mxu0
    %v985 = vadd.f32 %v371, %v984
    %v986 = vpop.f32.mrf.mxu0
    %v987 = vadd.f32 %v371, %v986
    %988 = vdwg.mxu0
    %989 = vmatpush.bf16.msra.mxu0 %v801
    %990 = vmatpush.bf16.msra.mxu0 %v795
    %991 = vmatpush.bf16.msra.mxu0 %v789
    %992 = vmatpush.bf16.msra.mxu0 %v783
    %993 = vmatpush.bf16.msra.mxu0 %v777
    %994 = vmatpush.bf16.msra.mxu0 %v771
    %995 = vmatpush.bf16.msra.mxu0 %v765
    %996 = vmatpush.bf16.msra.mxu0 %v759
    %997 = vmatmul.bf16.gmra.mxu0 %v407
    %v998 = vpop.f32.mrf.mxu0
    %v999 = vadd.f32 %v970, %v998
    %v1000 = vpop.f32.mrf.mxu0
    %v1001 = vadd.f32 %v972, %v1000
    %1002 = vmatmul.bf16.gmra.mxu0 %v409
    %v1003 = vpop.f32.mrf.mxu0
    %v1004 = vadd.f32 %v975, %v1003
    %v1005 = vpop.f32.mrf.mxu0
    %v1006 = vadd.f32 %v977, %v1005
    %1007 = vmatmul.bf16.gmra.mxu0 %v411
    %v1008 = vpop.f32.mrf.mxu0
    %v1009 = vadd.f32 %v980, %v1008
    %v1010 = vpop.f32.mrf.mxu0
    %v1011 = vadd.f32 %v982, %v1010
    %1012 = vmatmul.bf16.gmra.mxu0 %v413
    %v1013 = vpop.f32.mrf.mxu0
    %v1014 = vadd.f32 %v985, %v1013
    %v1015 = vpop.f32.mrf.mxu0
    %v1016 = vadd.f32 %v987, %v1015
    %1017 = vdwg.mxu0
    %1018 = vmatpush.bf16.msra.mxu0 %v754
    %1019 = vmatpush.bf16.msra.mxu0 %v748
    %1020 = vmatpush.bf16.msra.mxu0 %v742
    %1021 = vmatpush.bf16.msra.mxu0 %v736
    %1022 = vmatpush.bf16.msra.mxu0 %v730
    %1023 = vmatpush.bf16.msra.mxu0 %v724
    %1024 = vmatpush.bf16.msra.mxu0 %v718
    %1025 = vmatpush.bf16.msra.mxu0 %v712
    %1026 = vmatmul.bf16.gmra.mxu0 %v406
    %v1027 = vpop.f32.mrf.mxu0
    %v1028 = vadd.f32 %v372, %v1027
    %v1029 = vpop.f32.mrf.mxu0
    %v1030 = vadd.f32 %v372, %v1029
    %1031 = vmatmul.bf16.gmra.mxu0 %v408
    %v1032 = vpop.f32.mrf.mxu0
    %v1033 = vadd.f32 %v372, %v1032
    %v1034 = vpop.f32.mrf.mxu0
    %v1035 = vadd.f32 %v372, %v1034
    %1036 = vmatmul.bf16.gmra.mxu0 %v410
    %v1037 = vpop.f32.mrf.mxu0
    %v1038 = vadd.f32 %v372, %v1037
    %v1039 = vpop.f32.mrf.mxu0
    %v1040 = vadd.f32 %v372, %v1039
    %1041 = vmatmul.bf16.gmra.mxu0 %v412
    %v1042 = vpop.f32.mrf.mxu0
    %v1043 = vadd.f32 %v372, %v1042
    %v1044 = vpop.f32.mrf.mxu0
    %v1045 = vadd.f32 %v372, %v1044
    %1046 = vdwg.mxu0
    %1047 = vmatpush.bf16.msra.mxu0 %v802
    %1048 = vmatpush.bf16.msra.mxu0 %v796
    %1049 = vmatpush.bf16.msra.mxu0 %v790
    %1050 = vmatpush.bf16.msra.mxu0 %v784
    %1051 = vmatpush.bf16.msra.mxu0 %v778
    %1052 = vmatpush.bf16.msra.mxu0 %v772
    %1053 = vmatpush.bf16.msra.mxu0 %v766
    %1054 = vmatpush.bf16.msra.mxu0 %v760
    %1055 = vmatmul.bf16.gmra.mxu0 %v407
    %v1056 = vpop.f32.mrf.mxu0
    %v1057 = vadd.f32 %v1028, %v1056
    %v1058 = vpop.f32.mrf.mxu0
    %v1059 = vadd.f32 %v1030, %v1058
    %1060 = vmatmul.bf16.gmra.mxu0 %v409
    %v1061 = vpop.f32.mrf.mxu0
    %v1062 = vadd.f32 %v1033, %v1061
    %v1063 = vpop.f32.mrf.mxu0
    %v1064 = vadd.f32 %v1035, %v1063
    %1065 = vmatmul.bf16.gmra.mxu0 %v411
    %v1066 = vpop.f32.mrf.mxu0
    %v1067 = vadd.f32 %v1038, %v1066
    %v1068 = vpop.f32.mrf.mxu0
    %v1069 = vadd.f32 %v1040, %v1068
    %1070 = vmatmul.bf16.gmra.mxu0 %v413
    %v1071 = vpop.f32.mrf.mxu0
    %v1072 = vadd.f32 %v1043, %v1071
    %v1073 = vpop.f32.mrf.mxu0
    %v1074 = vadd.f32 %v1045, %v1073
    %1075 = vdwg.mxu0
    %1076 = vmatpush.bf16.msra.mxu0 %v755
    %1077 = vmatpush.bf16.msra.mxu0 %v749
    %1078 = vmatpush.bf16.msra.mxu0 %v743
    %1079 = vmatpush.bf16.msra.mxu0 %v737
    %1080 = vmatpush.bf16.msra.mxu0 %v731
    %1081 = vmatpush.bf16.msra.mxu0 %v725
    %1082 = vmatpush.bf16.msra.mxu0 %v719
    %1083 = vmatpush.bf16.msra.mxu0 %v713
    %1084 = vmatmul.bf16.gmra.mxu0 %v406
    %v1085 = vpop.f32.mrf.mxu0
    %v1086 = vadd.f32 %v373, %v1085
    %v1087 = vpop.f32.mrf.mxu0
    %v1088 = vadd.f32 %v373, %v1087
    %1089 = vmatmul.bf16.gmra.mxu0 %v408
    %v1090 = vpop.f32.mrf.mxu0
    %v1091 = vadd.f32 %v373, %v1090
    %v1092 = vpop.f32.mrf.mxu0
    %v1093 = vadd.f32 %v373, %v1092
    %1094 = vmatmul.bf16.gmra.mxu0 %v410
    %v1095 = vpop.f32.mrf.mxu0
    %v1096 = vadd.f32 %v373, %v1095
    %v1097 = vpop.f32.mrf.mxu0
    %v1098 = vadd.f32 %v373, %v1097
    %1099 = vmatmul.bf16.gmra.mxu0 %v412
    %v1100 = vpop.f32.mrf.mxu0
    %v1101 = vadd.f32 %v373, %v1100
    %v1102 = vpop.f32.mrf.mxu0
    %v1103 = vadd.f32 %v373, %v1102
    %1104 = vdwg.mxu0
    %1105 = vmatpush.bf16.msra.mxu0 %v803
    %1106 = vmatpush.bf16.msra.mxu0 %v797
    %1107 = vmatpush.bf16.msra.mxu0 %v791
    %1108 = vmatpush.bf16.msra.mxu0 %v785
    %1109 = vmatpush.bf16.msra.mxu0 %v779
    %1110 = vmatpush.bf16.msra.mxu0 %v773
    %1111 = vmatpush.bf16.msra.mxu0 %v767
    %1112 = vmatpush.bf16.msra.mxu0 %v761
    %1113 = vmatmul.bf16.gmra.mxu0 %v407
    %v1114 = vpop.f32.mrf.mxu0
    %v1115 = vadd.f32 %v1086, %v1114
    %v1116 = vpop.f32.mrf.mxu0
    %v1117 = vadd.f32 %v1088, %v1116
    %1118 = vmatmul.bf16.gmra.mxu0 %v409
    %v1119 = vpop.f32.mrf.mxu0
    %v1120 = vadd.f32 %v1091, %v1119
    %v1121 = vpop.f32.mrf.mxu0
    %v1122 = vadd.f32 %v1093, %v1121
    %1123 = vmatmul.bf16.gmra.mxu0 %v411
    %v1124 = vpop.f32.mrf.mxu0
    %v1125 = vadd.f32 %v1096, %v1124
    %v1126 = vpop.f32.mrf.mxu0
    %v1127 = vadd.f32 %v1098, %v1126
    %1128 = vmatmul.bf16.gmra.mxu0 %v413
    %v1129 = vpop.f32.mrf.mxu0
    %v1130 = vadd.f32 %v1101, %v1129
    %v1131 = vpop.f32.mrf.mxu0
    %v1132 = vadd.f32 %v1103, %v1131
    %1133 = vdwg.mxu0
    %1134 = vmatpush.bf16.msra.mxu0 %v756
    %1135 = vmatpush.bf16.msra.mxu0 %v750
    %1136 = vmatpush.bf16.msra.mxu0 %v744
    %1137 = vmatpush.bf16.msra.mxu0 %v738
    %1138 = vmatpush.bf16.msra.mxu0 %v732
    %1139 = vmatpush.bf16.msra.mxu0 %v726
    %1140 = vmatpush.bf16.msra.mxu0 %v720
    %1141 = vmatpush.bf16.msra.mxu0 %v714
    %1142 = vmatmul.bf16.gmra.mxu0 %v406
    %v1143 = vpop.f32.mrf.mxu0
    %v1144 = vadd.f32 %v374, %v1143
    %v1145 = vpop.f32.mrf.mxu0
    %v1146 = vadd.f32 %v374, %v1145
    %1147 = vmatmul.bf16.gmra.mxu0 %v408
    %v1148 = vpop.f32.mrf.mxu0
    %v1149 = vadd.f32 %v374, %v1148
    %v1150 = vpop.f32.mrf.mxu0
    %v1151 = vadd.f32 %v374, %v1150
    %1152 = vmatmul.bf16.gmra.mxu0 %v410
    %v1153 = vpop.f32.mrf.mxu0
    %v1154 = vadd.f32 %v374, %v1153
    %v1155 = vpop.f32.mrf.mxu0
    %v1156 = vadd.f32 %v374, %v1155
    %1157 = vmatmul.bf16.gmra.mxu0 %v412
    %v1158 = vpop.f32.mrf.mxu0
    %v1159 = vadd.f32 %v374, %v1158
    %v1160 = vpop.f32.mrf.mxu0
    %v1161 = vadd.f32 %v374, %v1160
    %1162 = vdwg.mxu0
    %1163 = vmatpush.bf16.msra.mxu0 %v804
    %1164 = vmatpush.bf16.msra.mxu0 %v798
    %1165 = vmatpush.bf16.msra.mxu0 %v792
    %1166 = vmatpush.bf16.msra.mxu0 %v786
    %1167 = vmatpush.bf16.msra.mxu0 %v780
    %1168 = vmatpush.bf16.msra.mxu0 %v774
    %1169 = vmatpush.bf16.msra.mxu0 %v768
    %1170 = vmatpush.bf16.msra.mxu0 %v762
    %1171 = vmatmul.bf16.gmra.mxu0 %v407
    %v1172 = vpop.f32.mrf.mxu0
    %v1173 = vadd.f32 %v1144, %v1172
    %v1174 = vpop.f32.mrf.mxu0
    %v1175 = vadd.f32 %v1146, %v1174
    %1176 = vmatmul.bf16.gmra.mxu0 %v409
    %v1177 = vpop.f32.mrf.mxu0
    %v1178 = vadd.f32 %v1149, %v1177
    %v1179 = vpop.f32.mrf.mxu0
    %v1180 = vadd.f32 %v1151, %v1179
    %1181 = vmatmul.bf16.gmra.mxu0 %v411
    %v1182 = vpop.f32.mrf.mxu0
    %v1183 = vadd.f32 %v1154, %v1182
    %v1184 = vpop.f32.mrf.mxu0
    %v1185 = vadd.f32 %v1156, %v1184
    %1186 = vmatmul.bf16.gmra.mxu0 %v413
    %v1187 = vpop.f32.mrf.mxu0
    %v1188 = vadd.f32 %v1159, %v1187
    %v1189 = vpop.f32.mrf.mxu0
    %v1190 = vadd.f32 %v1161, %v1189
    %1191 = vdwg.mxu0
    %1192 = vmatpush.bf16.msra.mxu0 %v757
    %1193 = vmatpush.bf16.msra.mxu0 %v751
    %1194 = vmatpush.bf16.msra.mxu0 %v745
    %1195 = vmatpush.bf16.msra.mxu0 %v739
    %1196 = vmatpush.bf16.msra.mxu0 %v733
    %1197 = vmatpush.bf16.msra.mxu0 %v727
    %1198 = vmatpush.bf16.msra.mxu0 %v721
    %1199 = vmatpush.bf16.msra.mxu0 %v715
    %1200 = vmatmul.bf16.gmra.mxu0 %v406
    %v1201 = vpop.f32.mrf.mxu0
    %v1202 = vadd.f32 %v375, %v1201
    %v1203 = vpop.f32.mrf.mxu0
    %v1204 = vadd.f32 %v375, %v1203
    %1205 = vmatmul.bf16.gmra.mxu0 %v408
    %v1206 = vpop.f32.mrf.mxu0
    %v1207 = vadd.f32 %v375, %v1206
    %v1208 = vpop.f32.mrf.mxu0
    %v1209 = vadd.f32 %v375, %v1208
    %1210 = vmatmul.bf16.gmra.mxu0 %v410
    %v1211 = vpop.f32.mrf.mxu0
    %v1212 = vadd.f32 %v375, %v1211
    %v1213 = vpop.f32.mrf.mxu0
    %v1214 = vadd.f32 %v375, %v1213
    %1215 = vmatmul.bf16.gmra.mxu0 %v412
    %v1216 = vpop.f32.mrf.mxu0
    %v1217 = vadd.f32 %v375, %v1216
    %v1218 = vpop.f32.mrf.mxu0
    %v1219 = vadd.f32 %v375, %v1218
    %1220 = vdwg.mxu0
    %1221 = vmatpush.bf16.msra.mxu0 %v805
    %1222 = vmatpush.bf16.msra.mxu0 %v799
    %1223 = vmatpush.bf16.msra.mxu0 %v793
    %1224 = vmatpush.bf16.msra.mxu0 %v787
    %1225 = vmatpush.bf16.msra.mxu0 %v781
    %1226 = vmatpush.bf16.msra.mxu0 %v775
    %1227 = vmatpush.bf16.msra.mxu0 %v769
    %1228 = vmatpush.bf16.msra.mxu0 %v763
    %1229 = vmatmul.bf16.gmra.mxu0 %v407
    %v1230 = vpop.f32.mrf.mxu0
    %v1231 = vadd.f32 %v1202, %v1230
    %v1232 = vpop.f32.mrf.mxu0
    %v1233 = vadd.f32 %v1204, %v1232
    %1234 = vmatmul.bf16.gmra.mxu0 %v409
    %v1235 = vpop.f32.mrf.mxu0
    %v1236 = vadd.f32 %v1207, %v1235
    %v1237 = vpop.f32.mrf.mxu0
    %v1238 = vadd.f32 %v1209, %v1237
    %1239 = vmatmul.bf16.gmra.mxu0 %v411
    %v1240 = vpop.f32.mrf.mxu0
    %v1241 = vadd.f32 %v1212, %v1240
    %v1242 = vpop.f32.mrf.mxu0
    %v1243 = vadd.f32 %v1214, %v1242
    %1244 = vmatmul.bf16.gmra.mxu0 %v413
    %v1245 = vpop.f32.mrf.mxu0
    %v1246 = vadd.f32 %v1217, %v1245
    %v1247 = vpop.f32.mrf.mxu0
    %v1248 = vadd.f32 %v1219, %v1247
    %1249 = vdwg.mxu0
    %v1250 = vpack.c.bf16 %v999, %v941
    %v1251 = vpack.c.bf16 %v1115, %v1057
    %v1252 = vpack.c.bf16 %v1231, %v1173
    %v1253 = vpack.c.bf16 %v1001, %v943
    %v1254 = vpack.c.bf16 %v1117, %v1059
    %v1255 = vpack.c.bf16 %v1233, %v1175
    %v1256 = vpack.c.bf16 %v1004, %v946
    %v1257 = vpack.c.bf16 %v1120, %v1062
    %v1258 = vpack.c.bf16 %v1236, %v1178
    %v1259 = vpack.c.bf16 %v1006, %v948
    %v1260 = vpack.c.bf16 %v1122, %v1064
    %v1261 = vpack.c.bf16 %v1238, %v1180
    %v1262 = vpack.c.bf16 %v1009, %v951
    %v1263 = vpack.c.bf16 %v1125, %v1067
    %v1264 = vpack.c.bf16 %v1241, %v1183
    %v1265 = vpack.c.bf16 %v1011, %v953
    %v1266 = vpack.c.bf16 %v1127, %v1069
    %v1267 = vpack.c.bf16 %v1243, %v1185
    %v1268 = vpack.c.bf16 %v1014, %v956
    %v1269 = vpack.c.bf16 %v1130, %v1072
    %v1270 = vpack.c.bf16 %v1246, %v1188
    %v1271 = vpack.c.bf16 %v1016, %v958
    %v1272 = vpack.c.bf16 %v1132, %v1074
    %v1273 = vpack.c.bf16 %v1248, %v1190
    %v1274 = vunpack.c.l.bf16 %v1250
    %v1275 = vunpack.c.h.bf16 %v1250
    %v1276 = vunpack.c.l.bf16 %v1251
    %v1277 = vunpack.c.h.bf16 %v1251
    %v1278 = vunpack.c.l.bf16 %v1252
    %v1279 = vunpack.c.h.bf16 %v1252
    %v1280 = vunpack.c.l.bf16 %v1253
    %v1281 = vunpack.c.h.bf16 %v1253
    %v1282 = vunpack.c.l.bf16 %v1254
    %v1283 = vunpack.c.h.bf16 %v1254
    %v1284 = vunpack.c.l.bf16 %v1255
    %v1285 = vunpack.c.h.bf16 %v1255
    %v1286 = vunpack.c.l.bf16 %v1256
    %v1287 = vunpack.c.h.bf16 %v1256
    %v1288 = vunpack.c.l.bf16 %v1257
    %v1289 = vunpack.c.h.bf16 %v1257
    %v1290 = vunpack.c.l.bf16 %v1258
    %v1291 = vunpack.c.h.bf16 %v1258
    %v1292 = vunpack.c.l.bf16 %v1259
    %v1293 = vunpack.c.h.bf16 %v1259
    %v1294 = vunpack.c.l.bf16 %v1260
    %v1295 = vunpack.c.h.bf16 %v1260
    %v1296 = vunpack.c.l.bf16 %v1261
    %v1297 = vunpack.c.h.bf16 %v1261
    %v1298 = vunpack.c.l.bf16 %v1262
    %v1299 = vunpack.c.h.bf16 %v1262
    %v1300 = vunpack.c.l.bf16 %v1263
    %v1301 = vunpack.c.h.bf16 %v1263
    %v1302 = vunpack.c.l.bf16 %v1264
    %v1303 = vunpack.c.h.bf16 %v1264
    %v1304 = vunpack.c.l.bf16 %v1265
    %v1305 = vunpack.c.h.bf16 %v1265
    %v1306 = vunpack.c.l.bf16 %v1266
    %v1307 = vunpack.c.h.bf16 %v1266
    %v1308 = vunpack.c.l.bf16 %v1267
    %v1309 = vunpack.c.h.bf16 %v1267
    %v1310 = vunpack.c.l.bf16 %v1268
    %v1311 = vunpack.c.h.bf16 %v1268
    %v1312 = vunpack.c.l.bf16 %v1269
    %v1313 = vunpack.c.h.bf16 %v1269
    %v1314 = vunpack.c.l.bf16 %v1270
    %v1315 = vunpack.c.h.bf16 %v1270
    %v1316 = vunpack.c.l.bf16 %v1271
    %v1317 = vunpack.c.h.bf16 %v1271
    %v1318 = vunpack.c.l.bf16 %v1272
    %v1319 = vunpack.c.h.bf16 %v1272
    %v1320 = vunpack.c.l.bf16 %v1273
    %v1321 = vunpack.c.h.bf16 %v1273
    %v1322 = vtanh.pop %v1274
    %v1323 = vtanh.pop %v1275
    %v1324 = vtanh.pop %v1276
    %v1325 = vtanh.pop %v1277
    %v1326 = vtanh.pop %v1278
    %v1327 = vtanh.pop %v1279
    %v1328 = vtanh.pop %v1280
    %v1329 = vtanh.pop %v1281
    %v1330 = vtanh.pop %v1282
    %v1331 = vtanh.pop %v1283
    %v1332 = vtanh.pop %v1284
    %v1333 = vtanh.pop %v1285
    %v1334 = vtanh.pop %v1286
    %v1335 = vtanh.pop %v1287
    %v1336 = vtanh.pop %v1288
    %v1337 = vtanh.pop %v1289
    %v1338 = vtanh.pop %v1290
    %v1339 = vtanh.pop %v1291
    %v1340 = vtanh.pop %v1292
    %v1341 = vtanh.pop %v1293
    %v1342 = vtanh.pop %v1294
    %v1343 = vtanh.pop %v1295
    %v1344 = vtanh.pop %v1296
    %v1345 = vtanh.pop %v1297
    %v1346 = vtanh.pop %v1298
    %v1347 = vtanh.pop %v1299
    %v1348 = vtanh.pop %v1300
    %v1349 = vtanh.pop %v1301
    %v1350 = vtanh.pop %v1302
    %v1351 = vtanh.pop %v1303
    %v1352 = vtanh.pop %v1304
    %v1353 = vtanh.pop %v1305
    %v1354 = vtanh.pop %v1306
    %v1355 = vtanh.pop %v1307
    %v1356 = vtanh.pop %v1308
    %v1357 = vtanh.pop %v1309
    %v1358 = vtanh.pop %v1310
    %v1359 = vtanh.pop %v1311
    %v1360 = vtanh.pop %v1312
    %v1361 = vtanh.pop %v1313
    %v1362 = vtanh.pop %v1314
    %v1363 = vtanh.pop %v1315
    %v1364 = vtanh.pop %v1316
    %v1365 = vtanh.pop %v1317
    %v1366 = vtanh.pop %v1318
    %v1367 = vtanh.pop %v1319
    %v1368 = vtanh.pop %v1320
    %v1369 = vtanh.pop %v1321
    %v1370 = vpack.c.bf16 %v1323, %v1322
    %v1371 = vpack.c.bf16 %v1325, %v1324
    %v1372 = vpack.c.bf16 %v1327, %v1326
    %v1373 = vpack.c.bf16 %v1329, %v1328
    %v1374 = vpack.c.bf16 %v1331, %v1330
    %v1375 = vpack.c.bf16 %v1333, %v1332
    %v1376 = vpack.c.bf16 %v1335, %v1334
    %v1377 = vpack.c.bf16 %v1337, %v1336
    %v1378 = vpack.c.bf16 %v1339, %v1338
    %v1379 = vpack.c.bf16 %v1341, %v1340
    %v1380 = vpack.c.bf16 %v1343, %v1342
    %v1381 = vpack.c.bf16 %v1345, %v1344
    %v1382 = vpack.c.bf16 %v1347, %v1346
    %v1383 = vpack.c.bf16 %v1349, %v1348
    %v1384 = vpack.c.bf16 %v1351, %v1350
    %v1385 = vpack.c.bf16 %v1353, %v1352
    %v1386 = vpack.c.bf16 %v1355, %v1354
    %v1387 = vpack.c.bf16 %v1357, %v1356
    %v1388 = vpack.c.bf16 %v1359, %v1358
    %v1389 = vpack.c.bf16 %v1361, %v1360
    %v1390 = vpack.c.bf16 %v1363, %v1362
    %v1391 = vpack.c.bf16 %v1365, %v1364
    %v1392 = vpack.c.bf16 %v1367, %v1366
    %v1393 = vpack.c.bf16 %v1369, %v1368
    %1394 = vst [vmem:[%s5] sm:$0xff] %v1370
    %1395 = vst [vmem:[%s5 + $0x8] sm:$0xff] %v1371
    %1396 = vst [vmem:[%s5 + $0x10] sm:$0xff] %v1372
    %1397 = vst [vmem:[%s5 + $0x18] sm:$0xff] %v1373
    %1398 = vst [vmem:[%s5 + $0x20] sm:$0xff] %v1374
    %1399 = vst [vmem:[%s5 + $0x28] sm:$0xff] %v1375
    %1400 = vst [vmem:[%s5 + $0x30] sm:$0xff] %v1376
    %1401 = vst [vmem:[%s5 + $0x38] sm:$0xff] %v1377
    %1402 = vst [vmem:[%s5 + $0x40] sm:$0xff] %v1378
    %1403 = vst [vmem:[%s5 + $0x48] sm:$0xff] %v1379
    %1404 = vst [vmem:[%s5 + $0x50] sm:$0xff] %v1380
    %1405 = vst [vmem:[%s5 + $0x58] sm:$0xff] %v1381
    %1406 = vst [vmem:[%s5 + $0x60] sm:$0xff] %v1382
    %1407 = vst [vmem:[%s5 + $0x68] sm:$0xff] %v1383
    %1408 = vst [vmem:[%s5 + $0x70] sm:$0xff] %v1384
    %1409 = vst [vmem:[%s5 + $0x78] sm:$0xff] %v1385
    %1410 = vst [vmem:[%s5 + $0x80] sm:$0xff] %v1386
    %1411 = vst [vmem:[%s5 + $0x88] sm:$0xff] %v1387
    %1412 = vst [vmem:[%s5 + $0x90] sm:$0xff] %v1388
    %1413 = vst [vmem:[%s5 + $0x98] sm:$0xff] %v1389
    %1414 = vst [vmem:[%s5 + $0xa0] sm:$0xff] %v1390
    %1415 = vst [vmem:[%s5 + $0xa8] sm:$0xff] %v1391
    %1416 = vst [vmem:[%s5 + $0xb0] sm:$0xff] %v1392
    %1417 = vst [vmem:[%s5 + $0xb8] sm:$0xff] %v1393
    // Predicated region
    $region30: #{generator_forward.1} parent=1 // pred_check
      _
    $region31: #{generator_forward.1} parent=1 // pred_check_branch
      %1419 = sbr.rel (0) target = $region33
    $region32: #{generator_forward.1} parent=1 // pred_region
      _
    $region33: #{generator_forward.1} parent=1 // pred_fallthru
      _
    // Predicated region
    $region34: #{generator_forward.1} parent=1 // pred_check
      _
    $region35: #{generator_forward.1} parent=1 // pred_check_branch
      %1421 = sbr.rel (0) target = $region37
    $region36: #{generator_forward.1} parent=1 // pred_region
      _
    $region37: #{generator_forward.1} parent=1 // pred_fallthru
      _
    %1422 = vsyncpa [#allocation4], 1

</llo_original>
